<compile_context>
chip_gen: v5e
topology: v5e:2x2
jax: 0.10.0
libtpu: 0.0.40
codegen_flags: <defaults>
</compile_context>

<pallas_src>
import functools
import math

import jax
import jax.numpy as jnp
from jax import lax
from jax.experimental import pallas as pl
from jax.experimental.pallas import tpu as pltpu


# ---------------------------------------------------------------------------
# Hardware-aware sizing helpers
# ---------------------------------------------------------------------------

def _round_up(x, m):
    return (x + m - 1) // m * m


def _cdiv(a, b):
    return -(-a // b)


@functools.lru_cache(maxsize=1)
def _vmem_capacity_bytes():
    try:
        return int(pltpu.get_tpu_info().vmem_capacity_bytes)
    except Exception:
        return 64 << 20  # conservative (v7x-sized) fallback


def _tile_caps():
    """Generation-aware tile caps (tm, tn, tk): bigger tiles where VMEM
    allows (v5e / v6e: 128 MiB), conservative on 64-MiB parts (v7x)."""
    if _vmem_capacity_bytes() >= (100 << 20):
        return 512, 1024, 1024
    return 256, 512, 512


def _pick_tile(dim, cap, align):
    """Pick (tile, padded_dim).

    dim <= cap : single full-dim block, zero padding (full-array-dim
                 exception to the (8,128) tiling rule).
    dim  > cap : n = cdiv(dim, cap) tiles, tile = round_up(cdiv(dim, n),
                 align), so padding slack is < align per tile (no ~60%
                 blow-ups for awkward shapes).
    """
    if dim <= cap:
        return dim, dim
    dim_al = _round_up(dim, align)
    n = _cdiv(dim_al, cap)
    t = _round_up(_cdiv(dim_al, n), align)
    return t, n * t


def _maybe_split_for_cores(tm, Mp, tn, Np):
    """On 2-TensorCore parts (64-MiB VMEM, i.e. v7x) make sure the 'parallel'
    grid axes expose >= 2 blocks so the second core is not idle."""
    if _vmem_capacity_bytes() < (100 << 20) and Mp // tm == 1 and Np // tn == 1:
        if tn % 256 == 0:          # keep 128 alignment after halving
            tn //= 2
        elif tm % 16 == 0:         # keep 8 alignment after halving
            tm //= 2
    return tm, tn


def _pad2(a, rows, cols):
    r, c = a.shape
    if (r, c) == (rows, cols):
        return a
    return jnp.pad(a, ((0, rows - r), (0, cols - c)))


# ---------------------------------------------------------------------------
# Kernels (all accumulate directly into the f32 output block)
# ---------------------------------------------------------------------------

_NT_DIMS = (((1,), (1,)), ((), ()))   # contract dim 1 of both: x @ w.T


def _linear_kernel(x_ref, w_ref, b_ref, o_ref):
    """Plain fused linear (eval path / pre-combined weights)."""
    k = pl.program_id(2)

    @pl.when(k == 0)
    def _():
        o_ref[...] = jnp.zeros_like(o_ref)

    o_ref[...] += lax.dot_general(x_ref[...], w_ref[...], _NT_DIMS,
                                  preferred_element_type=jnp.float32)

    @pl.when(k == pl.num_programs(2) - 1)
    def _():
        o_ref[...] += b_ref[...]


def _noisy_factored_kernel(x_ref, wmu_ref, wsig_ref, ein_ref, eout_ref,
                           b_ref, o_ref):
    """Training fast path: weight_epsilon = outer(eps_out, eps_in) is formed
    in-kernel from two vectors, so only 2 weight matrices stream from HBM."""
    k = pl.program_id(2)

    @pl.when(k == 0)
    def _():
        o_ref[...] = jnp.zeros_like(o_ref)

    eps = eout_ref[...] * ein_ref[...]            # (tn,1)*(1,tk) -> (tn,tk)
    w = wmu_ref[...] + wsig_ref[...] * eps        # noisy weight tile (tn,tk)
    o_ref[...] += lax.dot_general(x_ref[...], w, _NT_DIMS,
                                  preferred_element_type=jnp.float32)

    @pl.when(k == pl.num_programs(2) - 1)
    def _():
        o_ref[...] += b_ref[...]


def _noisy_full_eps_kernel(x_ref, wmu_ref, wsig_ref, weps_ref, b_ref, o_ref):
    """Fallback for an arbitrary (non-factored) weight_epsilon matrix."""
    k = pl.program_id(2)

    @pl.when(k == 0)
    def _():
        o_ref[...] = jnp.zeros_like(o_ref)

    w = wmu_ref[...] + wsig_ref[...] * weps_ref[...]
    o_ref[...] += lax.dot_general(x_ref[...], w, _NT_DIMS,
                                  preferred_element_type=jnp.float32)

    @pl.when(k == pl.num_programs(2) - 1)
    def _():
        o_ref[...] += b_ref[...]


# ---------------------------------------------------------------------------
# pallas_call builder
# ---------------------------------------------------------------------------

def _linear_pallas_call(kernel, operands, block_shapes, index_maps,
                        Mp, Np, Kp, tm, tn, tk, n_weight_mats):
    grid = (Mp // tm, Np // tn, Kp // tk)
    in_specs = [pl.BlockSpec(bs, im) for bs, im in zip(block_shapes, index_maps)]
    out_spec = pl.BlockSpec((tm, tn), lambda i, j, k: (i, j))

    # Per-step VMEM (pipeliner double-buffers each operand + output) plus
    # modest headroom, clamped to ~3/4 of physical VMEM
    # (~96 MiB on v5e/v6e, ~48 MiB on v7x).
    itemsize = 4
    per_step = sum(math.prod(bs) for bs in block_shapes) + tm * tn
    vmem_need = 2 * per_step * itemsize
    vmem_limit = max(32 << 20,
                     min(int(1.5 * vmem_need),
                         (_vmem_capacity_bytes() * 3) // 4))

    cost = pl.CostEstimate(
        flops=2 * Mp * Np * Kp,
        transcendentals=0,
        bytes_accessed=itemsize * (Mp * Kp * (Np // tn)
                                   + n_weight_mats * Np * Kp * (Mp // tm)
                                   + Mp * Np),
    )

    return pl.pallas_call(
        kernel,
        out_shape=jax.ShapeDtypeStruct((Mp, Np), jnp.float32),
        grid=grid,
        in_specs=in_specs,
        out_specs=out_spec,
        compiler_params=pltpu.CompilerParams(
            dimension_semantics=("parallel", "parallel", "arbitrary"),
            vmem_limit_bytes=int(vmem_limit)),
        cost_estimate=cost,
    )(*operands)


def _noisy_forward(x2, weight_mats, eps_vecs, bias_row, kernel):
    """x2: (B,K). weight_mats: tuple of (N,K) matrices (natural layout).
    eps_vecs: () or (eps_in (1,K), eps_out (N,1)). bias_row: (1,N)."""
    B, K = x2.shape
    N = weight_mats[0].shape[0]

    tm_cap, tn_cap, tk_cap = _tile_caps()
    tm, Mp = _pick_tile(B, tm_cap, 8)
    tn, Np = _pick_tile(N, tn_cap, 128)
    tk, Kp = _pick_tile(K, tk_cap, 128)
    tm, tn = _maybe_split_for_cores(tm, Mp, tn, Np)

    operands = [_pad2(x2, Mp, Kp)]
    block_shapes = [(tm, tk)]
    index_maps = [lambda i, j, k: (i, k)]

    for w in weight_mats:                       # natural (out,in) layout
        operands.append(_pad2(w, Np, Kp))
        block_shapes.append((tn, tk))
        index_maps.append(lambda i, j, k: (j, k))

    if eps_vecs:
        ein, eout = eps_vecs
        operands += [_pad2(ein, 1, Kp), _pad2(eout, Np, 1)]
        block_shapes += [(1, tk), (tn, 1)]
        index_maps += [lambda i, j, k: (0, k), lambda i, j, k: (j, 0)]

    operands.append(_pad2(bias_row, 1, Np))
    block_shapes.append((1, tn))
    index_maps.append(lambda i, j, k: (0, j))

    out_p = _linear_pallas_call(kernel, operands, block_shapes, index_maps,
                                Mp, Np, Kp, tm, tn, tk,
                                n_weight_mats=len(weight_mats))
    return out_p[:B, :N]


# ---------------------------------------------------------------------------
# Public wrappers
# ---------------------------------------------------------------------------

@functools.partial(jax.jit, static_argnames=("training",))
def noisy_linear(x, weight_mu, weight_sigma, bias_mu, bias_sigma,
                 eps_in, eps_out, training=True):
    """NoisyLinear forward with factored noise (the module's reset_noise()
    contract: weight_epsilon == outer(eps_out, eps_in), bias_epsilon == eps_out).

    x:                    (..., in_features)
    weight_mu/sigma:      (out_features, in_features)  -- natural layout, no
                          per-call transpose / pad
    bias_mu/sigma:        (out_features,)
    eps_in / eps_out:     (in_features,) / (out_features,)
    returns:              (..., out_features) float32
    """
    K = x.shape[-1]
    N = weight_mu.shape[0]
    lead = x.shape[:-1]
    x2 = x.reshape((-1, K))

    if training:
        b_eff = (bias_mu + bias_sigma * eps_out).reshape(1, N)   # N elems, cheap
        out = _noisy_forward(
            x2, (weight_mu, weight_sigma),
            (eps_in.reshape(1, K), eps_out.reshape(N, 1)),
            b_eff, _noisy_factored_kernel)
    else:
        out = _noisy_forward(x2, (weight_mu,), (),
                             bias_mu.reshape(1, N), _linear_kernel)
    return out.reshape(lead + (N,))


@functools.partial(jax.jit, static_argnames=("training",))
def noisy_linear_full_eps(x, weight_mu, weight_sigma, weight_epsilon,
                          bias_mu, bias_sigma, bias_epsilon, training=True):
    """Exact PyTorch-signature fallback (streams the full (N,K) epsilon).
    Prefer noisy_linear() when the noise is factored: 1/3 less weight HBM."""
    K = x.shape[-1]
    N = weight_mu.shape[0]
    lead = x.shape[:-1]
    x2 = x.reshape((-1, K))

    if training:
        b_eff = (bias_mu + bias_sigma * bias_epsilon).reshape(1, N)
        out = _noisy_forward(x2, (weight_mu, weight_sigma, weight_epsilon), (),
                             b_eff, _noisy_full_eps_kernel)
    else:
        out = _noisy_forward(x2, (weight_mu,), (),
                             bias_mu.reshape(1, N), _linear_kernel)
    return out.reshape(lead + (N,))


@jax.jit
def linear_precombined(x, weight, bias):
    """Plain fused linear for callers that pre-combine w_eff / b_eff once per
    reset_noise() and reuse them across many forwards."""
    K = x.shape[-1]
    N = weight.shape[0]
    lead = x.shape[:-1]
    out = _noisy_forward(x.reshape((-1, K)), (weight,), (),
                         bias.reshape(1, N), _linear_kernel)
    return out.reshape(lead + (N,))


# ---------------------------------------------------------------------------
# Parameter / noise init mirroring the PyTorch module (plain JAX, not a kernel)
# ---------------------------------------------------------------------------

def _scale_noise(key, size):
    """f(eps) = sign(eps) * sqrt(|eps|), eps ~ N(0, 1)."""
    noise = jax.random.normal(key, (size,), dtype=jnp.float32)
    return jnp.sign(noise) * jnp.sqrt(jnp.abs(noise))


def init_noisy_linear(key, in_features, out_features, std_init=0.5):
    k_wmu, k_bmu = jax.random.split(key)
    mu_range = 1.0 / math.sqrt(in_features)
    weight_mu = jax.random.uniform(k_wmu, (out_features, in_features),
                                   jnp.float32, minval=-mu_range, maxval=mu_range)
    weight_sigma = jnp.full((out_features, in_features),
                            std_init / math.sqrt(in_features), jnp.float32)
    bias_mu = jax.random.uniform(k_bmu, (out_features,), jnp.float32,
                                 minval=-mu_range, maxval=mu_range)
    bias_sigma = jnp.full((out_features,),
                          std_init / math.sqrt(out_features), jnp.float32)
    return weight_mu, weight_sigma, bias_mu, bias_sigma


def reset_noise(key, in_features, out_features):
    """Returns the factored noise (eps_in, eps_out).  The module stores
    weight_epsilon = outer(eps_out, eps_in) and bias_epsilon = eps_out."""
    k_in, k_out = jax.random.split(key)
    return _scale_noise(k_in, in_features), _scale_noise(k_out, out_features)


# ---------------------------------------------------------------------------
# Self-test
# ---------------------------------------------------------------------------

if __name__ == "__main__":
    key = jax.random.PRNGKey(0)
    k_params, k_noise, k_x, k_x2 = jax.random.split(key, 4)

    HI = lax.Precision.HIGHEST

    batch, in_features, out_features = 4, 32, 16
    wmu, wsig, bmu, bsig = init_noisy_linear(k_params, in_features, out_features)
    eps_in, eps_out = reset_noise(k_noise, in_features, out_features)
    weight_epsilon = jnp.outer(eps_out, eps_in)
    bias_epsilon = eps_out

    x = jax.random.normal(k_x, (batch, in_features), dtype=jnp.float32)

    w_eff = wmu + wsig * weight_epsilon
    b_eff = bmu + bsig * bias_epsilon
    ref_train = jnp.matmul(x, w_eff.T, precision=HI) + b_eff
    ref_eval = jnp.matmul(x, wmu.T, precision=HI) + bmu

    # Training-mode fast path (factored noise: 2 weight matrices streamed).
    out = noisy_linear(x, wmu, wsig, bmu, bsig, eps_in, eps_out, training=True)
    jax.block_until_ready(out)
    assert out.shape == (batch, out_features)
    assert jnp.allclose(out, ref_train, atol=1e-4, rtol=1e-4)

    # Eval mode (mu only).
    out_eval = noisy_linear(x, wmu, wsig, bmu, bsig, eps_in, eps_out,
                            training=False)
    jax.block_until_ready(out_eval)
    assert jnp.allclose(out_eval, ref_eval, atol=1e-4, rtol=1e-4)

    # Full-epsilon fallback (PyTorch-signature compatible).
    out_full = noisy_linear_full_eps(x, wmu, wsig, weight_epsilon,
                                     bmu, bsig, bias_epsilon, training=True)
    jax.block_until_ready(out_full)
    assert jnp.allclose(out_full, ref_train, atol=1e-4, rtol=1e-4)

    # Pre-combined weights (noise reused across many forwards).
    out_pre = linear_precombined(x, w_eff, b_eff)
    jax.block_until_ready(out_pre)
    assert jnp.allclose(out_pre, ref_train, atol=1e-4, rtol=1e-4)

    # Slightly larger, non-128-aligned layer with 3-D leading batch dims
    # (exercises full-dim blocks for unaligned dims + the reshape path).
    in2, out2 = 80, 40
    wmu2, wsig2, bmu2, bsig2 = init_noisy_linear(k_params, in2, out2)
    ein2, eout2 = reset_noise(k_noise, in2, out2)
    x2 = jax.random.normal(k_x2, (2, 3, in2), dtype=jnp.float32)

    out2_k = noisy_linear(x2, wmu2, wsig2, bmu2, bsig2, ein2, eout2,
                          training=True)
    jax.block_until_ready(out2_k)
    w2_eff = wmu2 + wsig2 * jnp.outer(eout2, ein2)
    ref2 = jnp.einsum("abk,nk->abn", x2, w2_eff, precision=HI) \
        + (bmu2 + bsig2 * eout2)
    assert out2_k.shape == (2, 3, out2)
    assert jnp.allclose(out2_k, ref2, atol=1e-4, rtol=1e-4)

    print("KERNEL_OK")
</pallas_src>

<mosaic_0001>
module attributes {stable_mosaic.version = 11 : i64} {
  func.func @_noisy_factored_kernel(%arg0: i32, %arg1: i32, %arg2: i32, %arg3: memref<4x32xf32, #tpu.memory_space<vmem>>, %arg4: memref<16x32xf32, #tpu.memory_space<vmem>>, %arg5: memref<16x32xf32, #tpu.memory_space<vmem>>, %arg6: memref<1x32xf32, #tpu.memory_space<vmem>>, %arg7: memref<16x1xf32, #tpu.memory_space<vmem>>, %arg8: memref<1x16xf32, #tpu.memory_space<vmem>>, %arg9: memref<4x16xf32, #tpu.memory_space<vmem>>) attributes {dimension_semantics = [#tpu.dimension_semantics<parallel>, #tpu.dimension_semantics<parallel>, #tpu.dimension_semantics<arbitrary>], iteration_bounds = array<i64: 1, 1, 1>, scalar_prefetch = 0 : i64, scratch_operands = 0 : i64, tpu.core_type = #tpu.core_type<tc>, window_params = [{transform_indices = @transform_0, window_bounds = array<i64: 4, 32>}, {transform_indices = @transform_1, window_bounds = array<i64: 16, 32>}, {transform_indices = @transform_2, window_bounds = array<i64: 16, 32>}, {transform_indices = @transform_3, window_bounds = array<i64: 1, 32>}, {transform_indices = @transform_4, window_bounds = array<i64: 16, 1>}, {transform_indices = @transform_5, window_bounds = array<i64: 1, 16>}, {transform_indices = @transform_6, window_bounds = array<i64: 4, 16>}]} {
    %c0_i32 = arith.constant 0 : i32
    %0 = arith.cmpi eq, %arg2, %c0_i32 : i32
    %1 = arith.extui %0 : i1 to i32
    %c0_i32_0 = arith.constant 0 : i32
    %2 = arith.cmpi ne, %1, %c0_i32_0 : i32
    scf.if %2 {
      %cst_16 = arith.constant 0.000000e+00 : f32
      %20 = vector.broadcast %cst_16 : f32 to vector<4x16xf32>
      %c0_17 = arith.constant 0 : index
      %c0_18 = arith.constant 0 : index
      %21 = vector.load %arg9[%c0_17, %c0_18] : memref<4x16xf32, #tpu.memory_space<vmem>>, vector<4x16xf32>
      tpu.vector_store %arg9[%c0_17, %c0_18], %20 {strides = array<i32>} : memref<4x16xf32, #tpu.memory_space<vmem>>, vector<4x16xf32>,
    } else {
    }
    %c0 = arith.constant 0 : index
    %c0_1 = arith.constant 0 : index
    %3 = vector.load %arg7[%c0, %c0_1] : memref<16x1xf32, #tpu.memory_space<vmem>>, vector<16x1xf32>
    %c0_2 = arith.constant 0 : index
    %c0_3 = arith.constant 0 : index
    %4 = vector.load %arg6[%c0_2, %c0_3] : memref<1x32xf32, #tpu.memory_space<vmem>>, vector<1x32xf32>
    %5 = vector.broadcast %3 : vector<16x1xf32> to vector<16x32xf32>
    %6 = vector.broadcast %4 : vector<1x32xf32> to vector<16x32xf32>
    %7 = arith.mulf %5, %6 : vector<16x32xf32>
    %c0_4 = arith.constant 0 : index
    %c0_5 = arith.constant 0 : index
    %8 = vector.load %arg4[%c0_4, %c0_5] : memref<16x32xf32, #tpu.memory_space<vmem>>, vector<16x32xf32>
    %c0_6 = arith.constant 0 : index
    %c0_7 = arith.constant 0 : index
    %9 = vector.load %arg5[%c0_6, %c0_7] : memref<16x32xf32, #tpu.memory_space<vmem>>, vector<16x32xf32>
    %10 = arith.mulf %9, %7 : vector<16x32xf32>
    %11 = arith.addf %8, %10 : vector<16x32xf32>
    %c0_8 = arith.constant 0 : index
    %c0_9 = arith.constant 0 : index
    %12 = vector.load %arg9[%c0_8, %c0_9] : memref<4x16xf32, #tpu.memory_space<vmem>>, vector<4x16xf32>
    %c0_10 = arith.constant 0 : index
    %c0_11 = arith.constant 0 : index
    %13 = vector.load %arg3[%c0_10, %c0_11] : memref<4x32xf32, #tpu.memory_space<vmem>>, vector<4x32xf32>
    %cst = arith.constant dense<0.000000e+00> : vector<4x16xf32>
    %14 = tpu.matmul %13, %11, %cst {dimension_numbers = #tpu.dot_dimension_numbers<[1], [1], [0], [0], [0, 0, 1, 0], [], []>} : vector<4x32xf32>, vector<16x32xf32>, vector<4x16xf32> -> vector<4x16xf32>
    %15 = arith.addf %12, %14 : vector<4x16xf32>
    %c0_12 = arith.constant 0 : index
    %c0_13 = arith.constant 0 : index
    %16 = vector.load %arg9[%c0_12, %c0_13] : memref<4x16xf32, #tpu.memory_space<vmem>>, vector<4x16xf32>
    tpu.vector_store %arg9[%c0_12, %c0_13], %15 {strides = array<i32>} : memref<4x16xf32, #tpu.memory_space<vmem>>, vector<4x16xf32>,
    %c0_i32_14 = arith.constant 0 : i32
    %17 = arith.cmpi eq, %arg2, %c0_i32_14 : i32
    %18 = arith.extui %17 : i1 to i32
    %c0_i32_15 = arith.constant 0 : i32
    %19 = arith.cmpi ne, %18, %c0_i32_15 : i32
    scf.if %19 {
      %c0_16 = arith.constant 0 : index
      %c0_17 = arith.constant 0 : index
      %20 = vector.load %arg9[%c0_16, %c0_17] : memref<4x16xf32, #tpu.memory_space<vmem>>, vector<4x16xf32>
      %c0_18 = arith.constant 0 : index
      %c0_19 = arith.constant 0 : index
      %21 = vector.load %arg8[%c0_18, %c0_19] : memref<1x16xf32, #tpu.memory_space<vmem>>, vector<1x16xf32>
      %22 = vector.broadcast %21 : vector<1x16xf32> to vector<4x16xf32>
      %23 = arith.addf %20, %22 : vector<4x16xf32>
      %c0_20 = arith.constant 0 : index
      %c0_21 = arith.constant 0 : index
      %24 = vector.load %arg9[%c0_20, %c0_21] : memref<4x16xf32, #tpu.memory_space<vmem>>, vector<4x16xf32>
      tpu.vector_store %arg9[%c0_20, %c0_21], %23 {strides = array<i32>} : memref<4x16xf32, #tpu.memory_space<vmem>>, vector<4x16xf32>,
    } else {
    }
    return
  }
  func.func @transform_0(%arg0: i32, %arg1: i32, %arg2: i32) -> (i32, i32) {
    %c0_i32 = arith.constant 0 : i32
    return %arg0, %arg2 : i32, i32
  }
  func.func @transform_1(%arg0: i32, %arg1: i32, %arg2: i32) -> (i32, i32) {
    %c0_i32 = arith.constant 0 : i32
    return %arg1, %arg2 : i32, i32
  }
  func.func @transform_2(%arg0: i32, %arg1: i32, %arg2: i32) -> (i32, i32) {
    %c0_i32 = arith.constant 0 : i32
    return %arg1, %arg2 : i32, i32
  }
  func.func @transform_3(%arg0: i32, %arg1: i32, %arg2: i32) -> (i32, i32) {
    %c0_i32 = arith.constant 0 : i32
    %c0_i32_0 = arith.constant 0 : i32
    return %c0_i32, %arg2 : i32, i32
  }
  func.func @transform_4(%arg0: i32, %arg1: i32, %arg2: i32) -> (i32, i32) {
    %c0_i32 = arith.constant 0 : i32
    %c0_i32_0 = arith.constant 0 : i32
    return %arg1, %c0_i32 : i32, i32
  }
  func.func @transform_5(%arg0: i32, %arg1: i32, %arg2: i32) -> (i32, i32) {
    %c0_i32 = arith.constant 0 : i32
    %c0_i32_0 = arith.constant 0 : i32
    return %c0_i32, %arg1 : i32, i32
  }
  func.func @transform_6(%arg0: i32, %arg1: i32, %arg2: i32) -> (i32, i32) {
    %c0_i32 = arith.constant 0 : i32
    return %arg0, %arg1 : i32, i32
  }
}

</mosaic_0001>

<llo_original>
// kernel: noisy_linear.1
$region0: #{noisy_linear.1}
  #allocation0 [shape = 'u32[]', space=smem, size = 0x4, offset = 0x4, fixed_abs, tag = 'smem constant byte address 0x4 - core index']
  #allocation1 [shape = 'u32[72,128]{1,0:T(1,128)}', space=vmem, size = 0x9000, scoped, tag = 'internal scratch']
  %s0 = inlined_call_operand.vmem [shape: f32[4,32], index: 0, kind: input, shape index: {}]
  %s1 = inlined_call_operand.vmem [shape: f32[16,32], index: 1, kind: input, shape index: {}]
  %s2 = inlined_call_operand.hbm [shape: f32[16,32], index: 2, kind: input, shape index: {}]
  %s3 = inlined_call_operand.vmem [shape: f32[1,32], index: 3, kind: input, shape index: {}]
  %s4 = inlined_call_operand.vmem [shape: f32[16,1], index: 4, kind: input, shape index: {}]
  %s5 = inlined_call_operand.vmem [shape: f32[1,16], index: 5, kind: input, shape index: {}]
  %s6 = inlined_call_operand.hbm [shape: f32[4,16], index: 6, kind: output, shape index: {}]
  %s7 = sld [smem:[#allocation0]]
  $region46: #{noisy_linear.1} parent=0
    _
  %s9 = ssub.s32 1, %s7
  %s10 = scalar_select 0, %s9, %s7
  $region1: #{noisy_linear.1} parent=0
    #allocation2 [shape = 'u8[8192]{0}', space=vmem, size = 0x2000, scoped, tag = 'input window, operand 2, single buffered']
    #allocation3 [shape = 's32[1]{0}', space=sflag, size = 0x4, scoped, tag = 'scoped memory for noisy_linear.1']
    #allocation4 [shape = 's32[1]{0}', space=sflag, size = 0x4, scoped, tag = 'scoped memory for noisy_linear.1']
    #allocation5 [shape = 'u8[2048]{0}', space=vmem, size = 0x800, scoped, tag = 'output window, operand 0, single buffered']
    %11 = vsyncpa [#allocation3], 0
    %12 = vsyncpa [#allocation4], 0
    // Predicated region
    $region2: #{noisy_linear.1} parent=1 // pred_check
      _
    $region3: #{noisy_linear.1} parent=1 // pred_check_branch
      %14 = sbr.rel (0) target = $region5
    $region4: #{noisy_linear.1} parent=1 // pred_region
      _
    $region5: #{noisy_linear.1} parent=1 // pred_fallthru
      _
    // Predicated region
    $region6: #{noisy_linear.1} parent=1 // pred_check
      _
    $region7: #{noisy_linear.1} parent=1 // pred_check_branch
      %16 = sbr.rel (0) target = $region9
    $region8: #{noisy_linear.1} parent=1 // pred_region
      _
    $region9: #{noisy_linear.1} parent=1 // pred_fallthru
      _
    // Predicated region
    $region10: #{noisy_linear.1} parent=1 // pred_check
      _
    $region11: #{noisy_linear.1} parent=1 // pred_check_branch
      %18 = sbr.rel (0) target = $region13
    $region12: #{noisy_linear.1} parent=1 // pred_region
      %20 = vsyncadd [#allocation3], 0
      %s21 = sshll.u32 %s2, 4
      %s22 = int_to_ptr.hbm [resolvable:$true] %s21
      %s23 = sshll.u32 [#allocation2], 4
      %s24 = int_to_ptr.vmem [resolvable:$true] %s23
      %29 = dma.hbm_to_vmem [thread:$0]  %s22, 256, %s24, [#allocation3], 128, 128, 8
    $region13: #{noisy_linear.1} parent=1 // pred_fallthru
      _
    // Predicated region
    $region14: #{noisy_linear.1} parent=1 // pred_check
      _
    $region15: #{noisy_linear.1} parent=1 // pred_check_branch
      %31 = sbr.rel (0) target = $region17
    $region16: #{noisy_linear.1} parent=1 // pred_region
      _
    $region17: #{noisy_linear.1} parent=1 // pred_fallthru
      _
    // Predicated region
    $region18: #{noisy_linear.1} parent=1 // pred_check
      _
    $region19: #{noisy_linear.1} parent=1 // pred_check_branch
      %33 = sbr.rel (0) target = $region21
    $region20: #{noisy_linear.1} parent=1 // pred_region
      _
    $region21: #{noisy_linear.1} parent=1 // pred_fallthru
      _
    // Predicated region
    $region22: #{noisy_linear.1} parent=1 // pred_check
      _
    $region23: #{noisy_linear.1} parent=1 // pred_check_branch
      %35 = sbr.rel (0) target = $region25
    $region24: #{noisy_linear.1} parent=1 // pred_region
      _
    $region25: #{noisy_linear.1} parent=1 // pred_fallthru
      _
    // Predicated region
    $region26: #{noisy_linear.1} parent=1 // pred_check
      _
    $region27: #{noisy_linear.1} parent=1 // pred_check_branch
      %37 = sbr.rel (0) target = $region29
    $region28: #{noisy_linear.1} parent=1 // pred_region
      %39 = dma.done [#allocation3], 256
    $region29: #{noisy_linear.1} parent=1 // pred_fallthru
      _
    %p40 = scmp.eq.s32.totalorder 0, 0
    // Predicated region
    $region30: #{noisy_linear.1} parent=1 // pred_check
      %p41 = pneg %p40
    $region31: #{noisy_linear.1} parent=1 // pred_check_branch
      %43 = sbr.rel (%p41) target = $region33
    $region32: #{noisy_linear.1} parent=1 // pred_region
      %vm44 = vcmask 125952
      %45 = vst.msk [vmem:[#allocation5] sm:$0xf] %vm44, 0.0
    $region33: #{noisy_linear.1} parent=1 // pred_fallthru
      _
    %v46 = vld [vmem:[%s4] sm:$0xff]
    %v47 = vld [vmem:[%s4 + $0x8] sm:$0xff]
    %v48 = vld [vmem:[%s3] sm:$0x1]
    %50 = vset.pattern.permute.xlu0 0
    %51 = vperm.xlu0 %50, %v46
    %v52 = vpop.permute.xlu0 %51
    %55 = vset.pattern.permute.xlu0 0
    %56 = vperm.xlu0 %55, %v47
    %v57 = vpop.permute.xlu0 %56
    %v60 = vperm.slane %v48, 0
    %v62 = vmul.f32 %v52, %v60
    %v63 = vmul.f32 %v57, %v60
    %v64 = vld [vmem:[%s1] sm:$0xff]
    %v65 = vld [vmem:[%s1 + $0x8] sm:$0xff]
    %v66 = vld [vmem:[#allocation2] sm:$0xff]
    %v67 = vld [vmem:[#allocation2 + $0x8] sm:$0xff]
    %v68 = vmul.f32 %v66, %v62
    %v69 = vmul.f32 %v67, %v63
    %v70 = vadd.f32 %v64, %v68
    %v71 = vadd.f32 %v65, %v69
    %v72 = vld [vmem:[#allocation5] sm:$0xf]
    %v73 = vld [vmem:[%s0] sm:$0xf]
    %vm74 = vcmask 261120
    %v76 = vsel %vm74, %v73, 0
    %v79 = vsel %vm74, %v70, 0
    %v82 = vsel %vm74, %v71, 0
    %84 = vmatpush.xpose.msra.mxu0 0.0
    %85 = vmatpush.xpose.msra.mxu0 0.0
    %86 = vmatpush.xpose.msra.mxu0 0.0
    %87 = vmatpush.xpose.msra.mxu0 0.0
    %88 = vmatpush.xpose.msra.mxu0 0.0
    %89 = vmatpush.xpose.msra.mxu0 0.0
    %90 = vmatpush.xpose.msra.mxu0 0.0
    %91 = vmatpush.xpose.msra.mxu0 0.0
    %92 = vmatpush.xpose.msra.mxu0 0.0
    %93 = vmatpush.xpose.msra.mxu0 0.0
    %94 = vmatpush.xpose.msra.mxu0 0.0
    %95 = vmatpush.xpose.msra.mxu0 0.0
    %96 = vmatpush.xpose.msra.mxu0 0.0
    %97 = vmatpush.xpose.msra.mxu0 0.0
    %98 = vmatpush.xpose.msra.mxu0 %v82
    %99 = vmatpush.xpose.msra.mxu0 %v79
    %100 = vmatmul.f32.gmra.mxu0 %v76
    %v101 = vpop.f32.mrf.mxu0
    %v102 = vadd.f32 0.0, %v101
    %103 = vdwg.mxu0
    %v104 = vadd.f32 %v72, %v102
    %vm105 = vcmask 125952
    %106 = vst.msk [vmem:[#allocation5] sm:$0xf] %vm105, %v104
    // Predicated region
    $region34: #{noisy_linear.1} parent=1 // pred_check
      %p107 = pneg %p40
    $region35: #{noisy_linear.1} parent=1 // pred_check_branch
      %109 = sbr.rel (%p107) target = $region37
    $region36: #{noisy_linear.1} parent=1 // pred_region
      %v110 = vld [vmem:[#allocation5] sm:$0xf]
      %v111 = vld [vmem:[%s5] sm:$0x1]
      %v113 = vperm.slane %v111, 0
      %v115 = vadd.f32 %v110, %v113
      %116 = vst.msk [vmem:[#allocation5] sm:$0xf] %vm105, %v115
    $region37: #{noisy_linear.1} parent=1 // pred_fallthru
      _
    // Predicated region
    $region38: #{noisy_linear.1} parent=1 // pred_check
      _
    $region39: #{noisy_linear.1} parent=1 // pred_check_branch
      %118 = sbr.rel (0) target = $region41
    $region40: #{noisy_linear.1} parent=1 // pred_region
      %120 = vsyncadd [#allocation4], 0
      %s122 = sshll.u32 [#allocation5], 4
      %s123 = int_to_ptr.vmem [resolvable:$true] %s122
      %s124 = sshll.u32 %s6, 4
      %s125 = int_to_ptr.hbm [resolvable:$true] %s124
      %127 = dma.vmem_to_hbm [thread:$0]  %s123, 64, %s125, [#allocation4]
    $region41: #{noisy_linear.1} parent=1 // pred_fallthru
      _
    // Predicated region
    $region42: #{noisy_linear.1} parent=1 // pred_check
      _
    $region43: #{noisy_linear.1} parent=1 // pred_check_branch
      %129 = sbr.rel (0) target = $region45
    $region44: #{noisy_linear.1} parent=1 // pred_region
      %131 = dma.done [#allocation4], 64
    $region45: #{noisy_linear.1} parent=1 // pred_fallthru
      _
    %132 = vsyncpa [#allocation3], 1
    %133 = vsyncpa [#allocation4], 1

</llo_original>
